<compile_context>
chip_gen: v5e
topology: v5e:2x2
jax: 0.10.0
libtpu: 0.0.40
codegen_flags: <defaults>
</compile_context>

<pallas_src>
import functools

import jax
import jax.numpy as jnp
from jax.experimental import pallas as pl
from jax.experimental.pallas import tpu as pltpu


def _choose_tiles(S, B, H, itemsize, target_bytes):
    """Pick (seq_tile, batch_tile) so one block is ~target_bytes and respects
    TPU tiling rules (block dim multiple of 8 on sublanes, or == full dim)."""
    if B <= 8:
        tb = B                              # full batch dim -> always legal
    else:
        tb = min((B // 8) * 8, 64)          # sublane-aligned batch slice
        while tb > 8 and 8 * tb * H * itemsize > target_bytes:
            tb -= 8
    rows = target_bytes // max(1, tb * H * itemsize)
    if rows >= S:
        ts = S                              # full seq dim
    else:
        ts = min(max(8, (rows // 8) * 8), S)
    return int(ts), int(tb)


def _locked_dropout_kernel(seed_ref, x_ref, o_ref, *, dropout):
    """Apply a locked dropout mask to one (TS, TB, H) block of x.

    The (TS, H) keep-mask is a pure function of (global seq row, hidden col,
    seed): identical across the batch grid axis (locked), decorrelated across
    seq tiles.
    """
    keep_prob = 1.0 - dropout
    ts, tb, h = x_ref.shape
    s_idx = pl.program_id(0)                # seq-tile index (NOT the batch one)

    # Per-element counters: global seq row and hidden column.
    rows = jax.lax.broadcasted_iota(jnp.int32, (ts, h), 0) + s_idx * ts
    cols = jax.lax.broadcasted_iota(jnp.int32, (ts, h), 1)
    r = rows.astype(jnp.uint32)
    c = cols.astype(jnp.uint32)
    seed_u = seed_ref[0].astype(jnp.uint32)

    # Counter-based hash (Weyl-style combine + murmur3-like finalizer).
    state = (r * jnp.uint32(0x9E3779B1)
             + c * jnp.uint32(0x85EBCA77)
             + seed_u * jnp.uint32(0xC2B2AE3D))
    state = state ^ (state >> 16)
    state = state * jnp.uint32(0x7FEB352D)
    state = state ^ (state >> 15)
    state = state * jnp.uint32(0x846CA68B)
    state = state ^ (state >> 16)

    # Bernoulli(keep_prob) via integer threshold compare (no float uniform).
    thr = jnp.uint32(min(int(keep_prob * 4294967296.0), 4294967295))
    keep = state < thr                      # (ts, h) bool, shared across batch

    x = x_ref[...]                          # (ts, tb, h), native dtype
    scale = jnp.asarray(1.0 / keep_prob, dtype=x.dtype)
    zero = jnp.asarray(0, dtype=x.dtype)
    o_ref[...] = jnp.where(keep[:, None, :], x * scale, zero)


def locked_dropout(x, *, dropout=0.5, training=True, seed=0,
                   block_bytes=2 * 1024 * 1024):
    """LockedDropout forward. x: (seq_len, batch, hidden)."""
    if (not training) or (not dropout):
        return x
    if dropout >= 1.0:
        # PyTorch would produce inf/NaN here (mask / 0); return the only
        # sensible limit instead: everything dropped.
        return jnp.zeros_like(x)

    assert x.ndim == 3, "LockedDropout expects (seq_len, batch, hidden)"
    S, B, H = x.shape
    itemsize = jnp.dtype(x.dtype).itemsize
    ts, tb = _choose_tiles(S, B, H, itemsize, block_bytes)
    grid = (pl.cdiv(S, ts), pl.cdiv(B, tb))

    seed_arr = jnp.array([seed], dtype=jnp.int32)
    kernel = functools.partial(_locked_dropout_kernel, dropout=float(dropout))

    return pl.pallas_call(
        kernel,
        out_shape=jax.ShapeDtypeStruct(x.shape, x.dtype),
        grid=grid,
        in_specs=[
            pl.BlockSpec(memory_space=pltpu.MemorySpace.SMEM),   # seed scalar
            pl.BlockSpec((ts, tb, H), lambda s, b: (s, b, 0)),   # x tile
        ],
        out_specs=pl.BlockSpec((ts, tb, H), lambda s, b: (s, b, 0)),
        compiler_params=pltpu.CompilerParams(
            dimension_semantics=("parallel", "parallel"),
            vmem_limit_bytes=32 * 1024 * 1024,
        ),
        cost_estimate=pl.CostEstimate(
            flops=2 * S * B * H,
            transcendentals=0,
            bytes_accessed=2 * S * B * H * itemsize,
        ),
    )(seed_arr, x)


if __name__ == "__main__":
    key = jax.random.PRNGKey(0)

    # Small shapes implied by the forward: (seq_len, batch, hidden)
    S, B, H = 8, 2, 32
    x = jax.random.normal(key, (S, B, H), dtype=jnp.float32)

    dropout = 0.5
    out = jax.block_until_ready(
        locked_dropout(x, dropout=dropout, training=True, seed=1234))

    # Sanity checks:
    #  - every element is either 0 or x / (1 - dropout)
    #  - the mask is identical across the batch dimension ("locked")
    scaled = x / (1.0 - dropout)
    is_zero = jnp.isclose(out, 0.0)
    is_scaled = jnp.isclose(out, scaled, rtol=1e-5, atol=1e-5)
    assert bool(jnp.all(is_zero | is_scaled)), "elements must be 0 or x/(1-p)"

    keep_b0 = jnp.where(jnp.abs(x[:, 0, :]) > 1e-6, out[:, 0, :] != 0.0, True)
    keep_b1 = jnp.where(jnp.abs(x[:, 1, :]) > 1e-6, out[:, 1, :] != 0.0, True)
    assert bool(jnp.all(keep_b0 == keep_b1)), "mask must be shared across batch"

    # Eval / dropout=0 path returns input unchanged.
    out_eval = jax.block_until_ready(
        locked_dropout(x, dropout=dropout, training=False))
    assert bool(jnp.all(out_eval == x))

    # Exercise a multi-tile grid (forced tiny blocks) to validate tiling,
    # per-tile decorrelation, and locked-across-batch semantics.
    S2, B2, H2 = 32, 4, 128
    x2 = jax.random.normal(jax.random.PRNGKey(1), (S2, B2, H2), dtype=jnp.float32)
    out2 = jax.block_until_ready(
        locked_dropout(x2, dropout=dropout, training=True, seed=7,
                       block_bytes=16 * 1024))
    scaled2 = x2 / (1.0 - dropout)
    ok2 = jnp.isclose(out2, 0.0) | jnp.isclose(out2, scaled2, rtol=1e-5, atol=1e-5)
    assert bool(jnp.all(ok2)), "tiled: elements must be 0 or x/(1-p)"

    keep0 = out2[:, 0, :] != 0.0
    for b in range(1, B2):
        kb = jnp.where(jnp.abs(x2[:, b, :]) > 1e-6, out2[:, b, :] != 0.0, keep0)
        assert bool(jnp.all(kb == keep0)), "tiled: mask must be locked over batch"
    # Different seq tiles must not repeat the same mask pattern.
    assert not bool(jnp.all(keep0[0:8, :] == keep0[8:16, :])), \
        "seq tiles must get decorrelated masks"

    print("KERNEL_OK")
</pallas_src>

<mosaic_0001>
module attributes {stable_mosaic.version = 11 : i64} {
  func.func @_locked_dropout_kernel(%arg0: i32, %arg1: i32, %arg2: memref<1xi32, #tpu.memory_space<smem>>, %arg3: memref<8x2x32xf32, #tpu.memory_space<vmem>>, %arg4: memref<8x2x32xf32, #tpu.memory_space<vmem>>) attributes {dimension_semantics = [#tpu.dimension_semantics<parallel>, #tpu.dimension_semantics<parallel>], iteration_bounds = array<i64: 1, 1>, scalar_prefetch = 0 : i64, scratch_operands = 0 : i64, tpu.core_type = #tpu.core_type<tc>, window_params = [{transform_indices = @transform_0, window_bounds = array<i64: 1>}, {transform_indices = @transform_1, window_bounds = array<i64: 8, 2, 32>}, {transform_indices = @transform_2, window_bounds = array<i64: 8, 2, 32>}]} {
    %0 = tpu.iota {dimensions = array<i32: 0>} : vector<8x32xi32>
    %c8_i32 = arith.constant 8 : i32
    %1 = arith.muli %arg0, %c8_i32 : i32
    %2 = vector.broadcast %1 : i32 to vector<8x32xi32>
    %3 = arith.addi %0, %2 : vector<8x32xi32>
    %4 = tpu.iota {dimensions = array<i32: 1>} : vector<8x32xi32>
    %c0 = arith.constant 0 : index
    %5 = memref.load %arg2[%c0] : memref<1xi32, #tpu.memory_space<smem>>
    %c-1640531535_i32 = arith.constant -1640531535 : i32
    %6 = vector.broadcast %c-1640531535_i32 : i32 to vector<8x32xi32>
    %7 = arith.muli %3, %6 : vector<8x32xi32>
    %c-2048144777_i32 = arith.constant -2048144777 : i32
    %8 = vector.broadcast %c-2048144777_i32 : i32 to vector<8x32xi32>
    %9 = arith.muli %4, %8 : vector<8x32xi32>
    %10 = arith.addi %7, %9 : vector<8x32xi32>
    %c-1028477379_i32 = arith.constant -1028477379 : i32
    %11 = arith.muli %5, %c-1028477379_i32 : i32
    %12 = vector.broadcast %11 : i32 to vector<8x32xi32>
    %13 = arith.addi %10, %12 : vector<8x32xi32>
    %c16_i32 = arith.constant 16 : i32
    %14 = vector.broadcast %c16_i32 : i32 to vector<8x32xi32>
    %15 = arith.shrui %13, %14 : vector<8x32xi32>
    %16 = arith.xori %13, %15 : vector<8x32xi32>
    %c2146121005_i32 = arith.constant 2146121005 : i32
    %17 = vector.broadcast %c2146121005_i32 : i32 to vector<8x32xi32>
    %18 = arith.muli %16, %17 : vector<8x32xi32>
    %c15_i32 = arith.constant 15 : i32
    %19 = vector.broadcast %c15_i32 : i32 to vector<8x32xi32>
    %20 = arith.shrui %18, %19 : vector<8x32xi32>
    %21 = arith.xori %18, %20 : vector<8x32xi32>
    %c-2073254261_i32 = arith.constant -2073254261 : i32
    %22 = vector.broadcast %c-2073254261_i32 : i32 to vector<8x32xi32>
    %23 = arith.muli %21, %22 : vector<8x32xi32>
    %c16_i32_0 = arith.constant 16 : i32
    %24 = vector.broadcast %c16_i32_0 : i32 to vector<8x32xi32>
    %25 = arith.shrui %23, %24 : vector<8x32xi32>
    %26 = arith.xori %23, %25 : vector<8x32xi32>
    %c-2147483648_i32 = arith.constant -2147483648 : i32
    %27 = vector.broadcast %c-2147483648_i32 : i32 to vector<8x32xi32>
    %28 = arith.cmpi ult, %26, %27 : vector<8x32xi32>
    %c0_1 = arith.constant 0 : index
    %c0_2 = arith.constant 0 : index
    %c0_3 = arith.constant 0 : index
    %29 = vector.load %arg3[%c0_1, %c0_2, %c0_3] : memref<8x2x32xf32, #tpu.memory_space<vmem>>, vector<8x2x32xf32>
    %30 = vector.shape_cast %28 : vector<8x32xi1> to vector<8x1x32xi1>
    %cst = arith.constant 2.000000e+00 : f32
    %31 = vector.broadcast %cst : f32 to vector<8x2x32xf32>
    %32 = arith.mulf %29, %31 : vector<8x2x32xf32>
    %cst_4 = arith.constant 0.000000e+00 : f32
    %33 = vector.shape_cast %30 : vector<8x1x32xi1> to vector<8x1x32xi1>
    %34 = vector.broadcast %33 : vector<8x1x32xi1> to vector<8x2x32xi1>
    %35 = vector.broadcast %cst_4 : f32 to vector<8x2x32xf32>
    %36 = arith.select %34, %32, %35 : vector<8x2x32xi1>, vector<8x2x32xf32>
    %c0_5 = arith.constant 0 : index
    %c0_6 = arith.constant 0 : index
    %c0_7 = arith.constant 0 : index
    %37 = vector.load %arg4[%c0_5, %c0_6, %c0_7] : memref<8x2x32xf32, #tpu.memory_space<vmem>>, vector<8x2x32xf32>
    tpu.vector_store %arg4[%c0_5, %c0_6, %c0_7], %36 {strides = array<i32>} : memref<8x2x32xf32, #tpu.memory_space<vmem>>, vector<8x2x32xf32>,
    return
  }
  func.func @transform_0(%arg0: i32, %arg1: i32) -> i32 {
    %c0_i32 = arith.constant 0 : i32
    %c0_i32_0 = arith.constant 0 : i32
    return %c0_i32 : i32
  }
  func.func @transform_1(%arg0: i32, %arg1: i32) -> (i32, i32, i32) {
    %c0_i32 = arith.constant 0 : i32
    %c0_i32_0 = arith.constant 0 : i32
    return %arg0, %arg1, %c0_i32 : i32, i32, i32
  }
  func.func @transform_2(%arg0: i32, %arg1: i32) -> (i32, i32, i32) {
    %c0_i32 = arith.constant 0 : i32
    %c0_i32_0 = arith.constant 0 : i32
    return %arg0, %arg1, %c0_i32 : i32, i32, i32
  }
}

</mosaic_0001>

<llo_original>
// kernel: tpu_custom_call.1
$region0: #{tpu_custom_call.1}
  #allocation0 [shape = 'u32[]', space=smem, size = 0x4, offset = 0x4, fixed_abs, tag = 'smem constant byte address 0x4 - core index']
  #allocation1 [shape = 'u32[72,128]{1,0:T(1,128)}', space=vmem, size = 0x9000, scoped, tag = 'internal scratch']
  #allocation2 [shape = 's32[1]{0:T(128)S(6)}', space=smem, size = 0x200, scoped, tag = 'scoped memory for tpu_custom_call.1']
  %s0 = inlined_call_operand.<no memory space> [shape: s32[1], index: 0, kind: input, shape index: {}]
  %s1 = inlined_call_operand.hbm [shape: f32[8,2,32], index: 1, kind: input, shape index: {}]
  %s2 = inlined_call_operand.hbm [shape: f32[8,2,32], index: 2, kind: output, shape index: {}]
  %s3 = sld [smem:[#allocation0]]
  $region22: #{tpu_custom_call.1} parent=0
    _
  %s5 = ssub.s32 1, %s3
  %s6 = scalar_select 0, %s5, %s3
  %7 = sst [smem:[#allocation2]] %s0
  $region1: #{tpu_custom_call.1} parent=0
    #allocation3 [shape = 'u8[8192]{0}', space=vmem, size = 0x2000, scoped, tag = 'input window, operand 1, single buffered']
    #allocation4 [shape = 's32[1]{0}', space=sflag, size = 0x4, scoped, tag = 'scoped memory for tpu_custom_call.1']
    #allocation5 [shape = 's32[1]{0}', space=sflag, size = 0x4, scoped, tag = 'scoped memory for tpu_custom_call.1']
    #allocation6 [shape = 'u8[8192]{0}', space=vmem, size = 0x2000, scoped, tag = 'output window, operand 0, single buffered']
    %8 = vsyncpa [#allocation4], 0
    %9 = vsyncpa [#allocation5], 0
    // Predicated region
    $region2: #{tpu_custom_call.1} parent=1 // pred_check
      _
    $region3: #{tpu_custom_call.1} parent=1 // pred_check_branch
      %11 = sbr.rel (0) target = $region5
    $region4: #{tpu_custom_call.1} parent=1 // pred_region
      _
    $region5: #{tpu_custom_call.1} parent=1 // pred_fallthru
      _
    // Predicated region
    $region6: #{tpu_custom_call.1} parent=1 // pred_check
      _
    $region7: #{tpu_custom_call.1} parent=1 // pred_check_branch
      %13 = sbr.rel (0) target = $region9
    $region8: #{tpu_custom_call.1} parent=1 // pred_region
      %15 = vsyncadd [#allocation4], 0
      %s16 = sshll.u32 %s1, 4
      %s17 = int_to_ptr.hbm [resolvable:$true] %s16
      %s18 = sshll.u32 [#allocation3], 4
      %s19 = int_to_ptr.vmem [resolvable:$true] %s18
      %24 = dma.hbm_to_vmem [thread:$0]  %s17, 256, %s19, [#allocation4], 32, 32, 2
    $region9: #{tpu_custom_call.1} parent=1 // pred_fallthru
      _
    // Predicated region
    $region10: #{tpu_custom_call.1} parent=1 // pred_check
      _
    $region11: #{tpu_custom_call.1} parent=1 // pred_check_branch
      %26 = sbr.rel (0) target = $region13
    $region12: #{tpu_custom_call.1} parent=1 // pred_region
      %28 = dma.done [#allocation4], 256
    $region13: #{tpu_custom_call.1} parent=1 // pred_fallthru
      _
    %v29 = vlaneseq
    %v30 = vshrl.u32 %v29, 7
    %s31 = smul.u32 0, 8
    %v32 = vstv %s31
    %v33 = vadd.s32 %v30, %v32
    %v34 = vlaneseq
    %v35 = vand.u32 %v34, 127
    %s36 = sld [smem:[#allocation2]]
    %v37 = vmul.u32 %v33, 2654435761
    %v38 = vmul.u32 %v35, 2246822519
    %v39 = vadd.s32 %v37, %v38
    %s40 = smul.u32 %s36, 3266489917
    %v41 = vstv %s40
    %v42 = vadd.s32 %v39, %v41
    %v43 = vshrl.u32 %v42, 16
    %v44 = vxor.u32 %v42, %v43
    %v45 = vmul.u32 %v44, 2146121005
    %v46 = vshrl.u32 %v45, 15
    %v47 = vxor.u32 %v45, %v46
    %v48 = vmul.u32 %v47, 2221713035
    %v49 = vshrl.u32 %v48, 16
    %v50 = vxor.u32 %v48, %v49
    %v51 = vadd.s32 %v50, 2147483648
    %vm53 = vcmp.lt.s32.totalorder %v51, 0
    %v54 = vld [vmem:[#allocation3] sm:$0x3]
    %v55 = vld [vmem:[#allocation3 + $0x2] sm:$0x3]
    %v56 = vld [vmem:[#allocation3 + $0x4] sm:$0x3]
    %v57 = vld [vmem:[#allocation3 + $0x6] sm:$0x3]
    %v58 = vld [vmem:[#allocation3 + $0x8] sm:$0x3]
    %v59 = vld [vmem:[#allocation3 + $0xa] sm:$0x3]
    %v60 = vld [vmem:[#allocation3 + $0xc] sm:$0x3]
    %v61 = vld [vmem:[#allocation3 + $0xe] sm:$0x3]
    %v62 = vsel %vm53, 1, 0
    %v63 = vrot.slane %v62, 1
    %v64 = vrot.slane %v62, 2
    %v65 = vrot.slane %v62, 3
    %v66 = vrot.slane %v62, 4
    %v67 = vrot.slane %v62, 5
    %v68 = vrot.slane %v62, 6
    %v69 = vrot.slane %v62, 7
    %vm70 = vcmp.ne.s32.totalorder %v63, 0
    %vm71 = vcmp.ne.s32.totalorder %v64, 0
    %vm72 = vcmp.ne.s32.totalorder %v65, 0
    %vm73 = vcmp.ne.s32.totalorder %v66, 0
    %vm74 = vcmp.ne.s32.totalorder %v67, 0
    %vm75 = vcmp.ne.s32.totalorder %v68, 0
    %vm76 = vcmp.ne.s32.totalorder %v69, 0
    %v77 = vmul.f32 %v54, 2.0
    %v78 = vmul.f32 %v55, 2.0
    %v79 = vmul.f32 %v56, 2.0
    %v80 = vmul.f32 %v57, 2.0
    %v81 = vmul.f32 %v58, 2.0
    %v82 = vmul.f32 %v59, 2.0
    %v83 = vmul.f32 %v60, 2.0
    %v84 = vmul.f32 %v61, 2.0
    %v85 = vsel %vm70, 1, 0
    %v86 = vsel %vm71, 1, 0
    %v87 = vsel %vm72, 1, 0
    %v88 = vsel %vm73, 1, 0
    %v89 = vsel %vm74, 1, 0
    %v90 = vsel %vm75, 1, 0
    %v91 = vsel %vm76, 1, 0
    %v92 = vperm.slane %v62, 0
    %v93 = vperm.slane %v85, 0
    %v94 = vperm.slane %v86, 0
    %v95 = vperm.slane %v87, 0
    %v96 = vperm.slane %v88, 0
    %v97 = vperm.slane %v89, 0
    %v98 = vperm.slane %v90, 0
    %v99 = vperm.slane %v91, 0
    %vm100 = vcmp.eq.s32.totalorder %v92, 1
    %vm101 = vcmp.eq.s32.totalorder %v93, 1
    %vm102 = vcmp.eq.s32.totalorder %v94, 1
    %vm103 = vcmp.eq.s32.totalorder %v95, 1
    %vm104 = vcmp.eq.s32.totalorder %v96, 1
    %vm105 = vcmp.eq.s32.totalorder %v97, 1
    %vm106 = vcmp.eq.s32.totalorder %v98, 1
    %vm107 = vcmp.eq.s32.totalorder %v99, 1
    %v108 = vsel %vm100, %v77, 0.0
    %v109 = vsel %vm101, %v78, 0.0
    %v110 = vsel %vm102, %v79, 0.0
    %v111 = vsel %vm103, %v80, 0.0
    %v112 = vsel %vm104, %v81, 0.0
    %v113 = vsel %vm105, %v82, 0.0
    %v114 = vsel %vm106, %v83, 0.0
    %v115 = vsel %vm107, %v84, 0.0
    %vm116 = vcmask 254976
    %117 = vst.msk [vmem:[#allocation6] sm:$0x3] %vm116, %v108
    %118 = vst.msk [vmem:[#allocation6 + $0x2] sm:$0x3] %vm116, %v109
    %119 = vst.msk [vmem:[#allocation6 + $0x4] sm:$0x3] %vm116, %v110
    %120 = vst.msk [vmem:[#allocation6 + $0x6] sm:$0x3] %vm116, %v111
    %121 = vst.msk [vmem:[#allocation6 + $0x8] sm:$0x3] %vm116, %v112
    %122 = vst.msk [vmem:[#allocation6 + $0xa] sm:$0x3] %vm116, %v113
    %123 = vst.msk [vmem:[#allocation6 + $0xc] sm:$0x3] %vm116, %v114
    %124 = vst.msk [vmem:[#allocation6 + $0xe] sm:$0x3] %vm116, %v115
    // Predicated region
    $region14: #{tpu_custom_call.1} parent=1 // pred_check
      _
    $region15: #{tpu_custom_call.1} parent=1 // pred_check_branch
      %126 = sbr.rel (0) target = $region17
    $region16: #{tpu_custom_call.1} parent=1 // pred_region
      %128 = vsyncadd [#allocation5], 0
      %s129 = sshll.u32 [#allocation6], 4
      %s130 = int_to_ptr.vmem [resolvable:$true] %s129
      %s131 = sshll.u32 %s2, 4
      %s132 = int_to_ptr.hbm [resolvable:$true] %s131
      %137 = dma.vmem_to_hbm [thread:$0]  %s130, 256, %s132, [#allocation5], 32, 32, 2
    $region17: #{tpu_custom_call.1} parent=1 // pred_fallthru
      _
    // Predicated region
    $region18: #{tpu_custom_call.1} parent=1 // pred_check
      _
    $region19: #{tpu_custom_call.1} parent=1 // pred_check_branch
      %139 = sbr.rel (0) target = $region21
    $region20: #{tpu_custom_call.1} parent=1 // pred_region
      %141 = dma.done [#allocation5], 256
    $region21: #{tpu_custom_call.1} parent=1 // pred_fallthru
      _
    %142 = vsyncpa [#allocation4], 1
    %143 = vsyncpa [#allocation5], 1

</llo_original>
